<compile_context>
chip_gen: v6e
topology: v6e:2x2x1
jax: 0.10.0
libtpu: 0.0.40
codegen_flags: <defaults>
</compile_context>

<pallas_src>
import jax
import jax.numpy as jnp
from jax.experimental import pallas as pl
from jax.experimental.pallas import tpu as pltpu

_LANE = 128                    # vreg lane width (keep last dim at 128)
_BLOCK_ROWS = 4096             # (4096,128) f32 block = 2 MiB per input block
_SINGLE_BLOCK_MAX_ROWS = 8192  # <= 4 MiB per input -> one grid-less call


def _num_row_splits():
    """2 row-splits (one per TensorCore) on v7x-class chips, else 1."""
    try:
        kind = jax.devices()[0].device_kind.lower()
    except Exception:
        return 1
    return 2 if "v7" in kind else 1


def _l1_sum_single_kernel(x_ref, t_ref, o_ref):
    # Whole problem in one VMEM block: no grid, no accumulator, no init branch.
    x = x_ref[...].astype(jnp.float32)
    t = t_ref[...].astype(jnp.float32)
    o_ref[...] = jnp.sum(jnp.abs(x - t), keepdims=True)


def _l1_sum_tiled_kernel(x_ref, t_ref, o_ref):
    # Grid = (row_splits [parallel], blocks_per_split [arbitrary, innermost]).
    i = pl.program_id(1)

    @pl.when(i == 0)
    def _():
        o_ref[...] = jnp.zeros_like(o_ref)

    # Native-dtype block was DMA'd; upcast to f32 on the VPU (hidden under DMA).
    x = x_ref[...].astype(jnp.float32)
    t = t_ref[...].astype(jnp.float32)
    d = jnp.abs(x - t)

    # Tree-reduce the (BLOCK_ROWS,128) diff to a single (8,128) vreg with pure
    # VPU adds (no XLU), then accumulate into the resident lane-dense output
    # block. Only 2 vector loads per input vreg; no full-block accumulator.
    o_ref[...] += d.reshape(_BLOCK_ROWS // 8, 8, _LANE).sum(axis=0)


def _l1_sum_single(x2, t2):
    """sum(|x2 - t2|) for a (rows<=8192, 128) slab, one grid-less call."""
    out = pl.pallas_call(
        _l1_sum_single_kernel,
        out_shape=jax.ShapeDtypeStruct((1, 1), jnp.float32),
        in_specs=[
            pl.BlockSpec(memory_space=pltpu.MemorySpace.VMEM),
            pl.BlockSpec(memory_space=pltpu.MemorySpace.VMEM),
        ],
        out_specs=pl.BlockSpec(memory_space=pltpu.MemorySpace.VMEM),
    )(x2, t2)
    return out[0, 0]


def _l1_sum_tiled(x2, t2, num_splits, blocks_per_split):
    """Tiled reduction over the first num_splits*blocks_per_split blocks of x2/t2."""
    n_elems = num_splits * blocks_per_split * _BLOCK_ROWS * _LANE
    itemsize = jnp.dtype(x2.dtype).itemsize
    in_map = lambda p, i: (p * blocks_per_split + i, 0)

    out = pl.pallas_call(
        _l1_sum_tiled_kernel,
        out_shape=jax.ShapeDtypeStruct((num_splits * 8, _LANE), jnp.float32),
        grid=(num_splits, blocks_per_split),
        in_specs=[
            pl.BlockSpec((_BLOCK_ROWS, _LANE), in_map),
            pl.BlockSpec((_BLOCK_ROWS, _LANE), in_map),
        ],
        # One resident (8,128) partial-sum block per row-split (lane-dense,
        # unmasked stores; distinct block per parallel core on v7x).
        out_specs=pl.BlockSpec((8, _LANE), lambda p, i: (p, 0)),
        compiler_params=pltpu.CompilerParams(
            dimension_semantics=("parallel", "arbitrary"),
        ),
        cost_estimate=pl.CostEstimate(
            flops=3 * n_elems,
            transcendentals=0,
            bytes_accessed=2 * n_elems * itemsize,
        ),
    )(x2, t2)
    # Tiny (<=16,128) final reduce of the per-split partials in plain JAX.
    return jnp.sum(out)


def _l1_sum_2d(x2, t2):
    """sum(|x2 - t2|) over a (rows, 128) slab, computed in Pallas."""
    rows = x2.shape[0]

    if rows <= _SINGLE_BLOCK_MAX_ROWS:
        return _l1_sum_single(x2, t2)

    num_splits = _num_row_splits()
    n_blocks = rows // _BLOCK_ROWS            # >= 2 here
    blocks_per_split = n_blocks // num_splits
    if blocks_per_split == 0:                 # defensive; cannot trigger given guards
        num_splits = 1
        blocks_per_split = n_blocks
    used_rows = num_splits * blocks_per_split * _BLOCK_ROWS

    # Hot loop is mask-free: only whole blocks go through the tiled kernel.
    total = _l1_sum_tiled(x2, t2, num_splits, blocks_per_split)

    if used_rows != rows:
        # Ragged remainder (< num_splits*_BLOCK_ROWS <= 8192 rows): grid-less kernel.
        total = total + _l1_sum_single(x2[used_rows:], t2[used_rows:])
    return total


def compute_transform_losses(inp, target):
    """Returns sum(|inp - target|) as a float32 scalar (F.l1_loss, size_average=False)."""
    xf = inp.reshape(-1)      # keep native dtype: upcast happens in-kernel
    tf = target.reshape(-1)
    n = xf.shape[0]

    n_main = (n // _LANE) * _LANE
    total = jnp.float32(0.0)

    if n_main:
        x2 = xf[:n_main].reshape(-1, _LANE)
        t2 = tf[:n_main].reshape(-1, _LANE)
        total = total + _l1_sum_2d(x2, t2)

    if n_main != n:
        # Sub-lane-width tail (< 128 elems): cheaper in plain JAX than padding.
        # TODO(synk): fold the tail into the grid-less kernel via a scalar-prefetched
        # length + in-kernel mask to drop this second dispatch for ragged sizes.
        xt = xf[n_main:].astype(jnp.float32)
        tt = tf[n_main:].astype(jnp.float32)
        total = total + jnp.sum(jnp.abs(xt - tt))

    return total


if __name__ == "__main__":
    key = jax.random.PRNGKey(0)
    k1, k2, k3, k4 = jax.random.split(key, 4)

    # Small NCHW shape consistent with the module's forward (2,4,16,16).
    x = jax.random.normal(k1, (2, 4, 16, 16), dtype=jnp.float32)
    t = jax.random.normal(k2, (2, 4, 16, 16), dtype=jnp.float32)
    loss = jax.block_until_ready(compute_transform_losses(x, t))
    ref = jnp.sum(jnp.abs(x - t))
    assert jnp.allclose(loss, ref, rtol=1e-5, atol=1e-5), (loss, ref)

    # Larger ragged size: exercises the tiled path, the whole-block remainder,
    # and the sub-lane tail.
    n_big = (3 * _BLOCK_ROWS + 100) * _LANE + 72
    xb = jax.random.normal(k3, (n_big,), dtype=jnp.float32)
    tb = jax.random.normal(k4, (n_big,), dtype=jnp.float32)
    loss_b = jax.block_until_ready(compute_transform_losses(xb, tb))
    ref_b = jnp.sum(jnp.abs(xb - tb))
    assert jnp.allclose(loss_b, ref_b, rtol=1e-4, atol=1.0), (loss_b, ref_b)

    print("KERNEL_OK")
</pallas_src>

<mosaic_0001>
module attributes {stable_mosaic.version = 11 : i64} {
  func.func @_l1_sum_single_kernel(%arg0: memref<16x128xf32, #tpu.memory_space<vmem>>, %arg1: memref<16x128xf32, #tpu.memory_space<vmem>>, %arg2: memref<1x1xf32, #tpu.memory_space<vmem>>) attributes {dimension_semantics = [], scalar_prefetch = 0 : i64, scratch_operands = 0 : i64, tpu.core_type = #tpu.core_type<tc>} {
    %c0 = arith.constant 0 : index
    %c0_0 = arith.constant 0 : index
    %0 = vector.load %arg0[%c0, %c0_0] : memref<16x128xf32, #tpu.memory_space<vmem>>, vector<16x128xf32>
    %c0_1 = arith.constant 0 : index
    %c0_2 = arith.constant 0 : index
    %1 = vector.load %arg1[%c0_1, %c0_2] : memref<16x128xf32, #tpu.memory_space<vmem>>, vector<16x128xf32>
    %2 = arith.subf %0, %1 : vector<16x128xf32>
    %3 = math.absf %2 : vector<16x128xf32>
    %4 = vector.shape_cast %3 : vector<16x128xf32> to vector<1x16x128xf32>
    %cst = arith.constant dense<0.000000e+00> : vector<1xf32>
    %5 = vector.multi_reduction <add>, %4, %cst [1, 2] : vector<1x16x128xf32> to vector<1xf32>
    %6 = vector.shape_cast %5 : vector<1xf32> to vector<1x1x1xf32>
    %7 = vector.extract %6[0, 0, 0] : f32 from vector<1x1x1xf32>
    %8 = vector.broadcast %7 : f32 to vector<1x1xf32>
    %c0_3 = arith.constant 0 : index
    %c0_4 = arith.constant 0 : index
    %9 = vector.load %arg2[%c0_3, %c0_4] : memref<1x1xf32, #tpu.memory_space<vmem>>, vector<1x1xf32>
    tpu.vector_store %arg2[%c0_3, %c0_4], %8 {strides = array<i32>} : memref<1x1xf32, #tpu.memory_space<vmem>>, vector<1x1xf32>,
    return
  }
}

</mosaic_0001>

<llo_original>
// kernel: tpu_custom_call.1
$region0: #{tpu_custom_call.1}
  #allocation0 [shape = 'u32[]', space=smem, size = 0x4, offset = 0x4, fixed_abs, tag = 'smem constant byte address 0x4 - core index']
  #allocation1 [shape = 'u32[144,128]{1,0:T(1,128)}', space=vmem, size = 0x12000, scoped, tag = 'internal scratch']
  %s0 = inlined_call_operand.hbm [shape: f32[16,128], index: 0, kind: input, shape index: {}]
  %s1 = inlined_call_operand.hbm [shape: f32[16,128], index: 1, kind: input, shape index: {}]
  %s2 = inlined_call_operand.hbm [shape: f32[1,1], index: 2, kind: output, shape index: {}]
  %s3 = sld [smem:[#allocation0]]
  $region26: #{tpu_custom_call.1} parent=0
    _
  %s5 = ssub.s32 1, %s3
  %s6 = scalar_select 0, %s5, %s3
  $region1: #{tpu_custom_call.1} parent=0
    #allocation2 [shape = 'u8[8192]{0}', space=vmem, size = 0x2000, scoped, tag = 'input window, operand 0, single buffered']
    #allocation3 [shape = 's32[1]{0}', space=sflag, size = 0x4, scoped, tag = 'scoped memory for tpu_custom_call.1']
    #allocation4 [shape = 's32[1]{0}', space=sflag, size = 0x4, scoped, tag = 'scoped memory for tpu_custom_call.1']
    #allocation5 [shape = 'u8[8192]{0}', space=vmem, size = 0x2000, scoped, tag = 'input window, operand 1, single buffered']
    #allocation6 [shape = 's32[1]{0}', space=sflag, size = 0x4, scoped, tag = 'scoped memory for tpu_custom_call.1']
    #allocation7 [shape = 'u8[512]{0}', space=vmem, size = 0x400, scoped, tag = 'output window, operand 0, single buffered']
    %7 = vsyncpa [#allocation3], 0
    %8 = vsyncpa [#allocation6], 0
    %9 = vsyncpa [#allocation4], 0
    // Predicated region
    $region2: #{tpu_custom_call.1} parent=1 // pred_check
      _
    $region3: #{tpu_custom_call.1} parent=1 // pred_check_branch
      %11 = sbr.rel (0) target = $region5
    $region4: #{tpu_custom_call.1} parent=1 // pred_region
      %s13 = ssub.s32 256, 256
      %14 = vsyncadd [#allocation3], %s13
      %s15 = sshll.u32 [#allocation2], 4
      %s16 = int_to_ptr.vmem [resolvable:$true] %s15
      %21 = dma.hbm_to_vmem [thread:$0]  %s0, 256, %s16, [#allocation3], 128, 128, 8
    $region5: #{tpu_custom_call.1} parent=1 // pred_fallthru
      _
    // Predicated region
    $region6: #{tpu_custom_call.1} parent=1 // pred_check
      _
    $region7: #{tpu_custom_call.1} parent=1 // pred_check_branch
      %23 = sbr.rel (0) target = $region9
    $region8: #{tpu_custom_call.1} parent=1 // pred_region
      %s25 = ssub.s32 256, 256
      %26 = vsyncadd [#allocation6], %s25
      %s27 = sshll.u32 [#allocation5], 4
      %s28 = int_to_ptr.vmem [resolvable:$true] %s27
      %33 = dma.hbm_to_vmem [thread:$0]  %s1, 256, %s28, [#allocation6], 128, 128, 8
    $region9: #{tpu_custom_call.1} parent=1 // pred_fallthru
      _
    // Predicated region
    $region10: #{tpu_custom_call.1} parent=1 // pred_check
      _
    $region11: #{tpu_custom_call.1} parent=1 // pred_check_branch
      %35 = sbr.rel (0) target = $region13
    $region12: #{tpu_custom_call.1} parent=1 // pred_region
      %36 = dma.done [#allocation3], 256
    $region13: #{tpu_custom_call.1} parent=1 // pred_fallthru
      _
    // Predicated region
    $region14: #{tpu_custom_call.1} parent=1 // pred_check
      _
    $region15: #{tpu_custom_call.1} parent=1 // pred_check_branch
      %38 = sbr.rel (0) target = $region17
    $region16: #{tpu_custom_call.1} parent=1 // pred_region
      %39 = dma.done [#allocation6], 256
    $region17: #{tpu_custom_call.1} parent=1 // pred_fallthru
      _
    %v40 = vld [vmem:[#allocation2] sm:$0xff]
    %v41 = vld [vmem:[#allocation2 + $0x8] sm:$0xff]
    %v42 = vld [vmem:[#allocation5] sm:$0xff]
    %v43 = vld [vmem:[#allocation5 + $0x8] sm:$0xff]
    %v44 = vsub.f32 %v40, %v42
    %v45 = vsub.f32 %v41, %v43
    %v46 = vand.u32 2147483647, %v44
    %v47 = vand.u32 2147483647, %v45
    %v48 = vadd.f32 %v46, %v47
    %49 = vadd.xlane.f32.xlu0 %v48
    %v50 = vpop.xlane.xlu0 %49
    %v51 = vrot.slane %v50, 4
    %v52 = vadd.f32 %v50, %v51
    %v53 = vrot.slane %v52, 2
    %v54 = vadd.f32 %v52, %v53
    %v55 = vrot.slane %v54, 1
    %v56 = vadd.f32 %v54, %v55
    %s57 = vtos %v56
    %v58 = vstv %s57
    %vm59 = vcmask 0
    %60 = vst.msk [vmem:[#allocation7] sm:$0x1] %vm59, %v58
    // Predicated region
    $region18: #{tpu_custom_call.1} parent=1 // pred_check
      _
    $region19: #{tpu_custom_call.1} parent=1 // pred_check_branch
      %62 = sbr.rel (0) target = $region21
    $region20: #{tpu_custom_call.1} parent=1 // pred_region
      %s64 = ssub.s32 16, 16
      %65 = vsyncadd [#allocation4], %s64
      %s67 = sshll.u32 [#allocation7], 4
      %s68 = int_to_ptr.vmem [resolvable:$true] %s67
      %70 = dma.vmem_to_hbm [thread:$0]  %s68, 16, %s2, [#allocation4]
    $region21: #{tpu_custom_call.1} parent=1 // pred_fallthru
      _
    // Predicated region
    $region22: #{tpu_custom_call.1} parent=1 // pred_check
      _
    $region23: #{tpu_custom_call.1} parent=1 // pred_check_branch
      %72 = sbr.rel (0) target = $region25
    $region24: #{tpu_custom_call.1} parent=1 // pred_region
      %73 = dma.done [#allocation4], 16
    $region25: #{tpu_custom_call.1} parent=1 // pred_fallthru
      _
    %74 = vsyncpa [#allocation3], 1
    %75 = vsyncpa [#allocation6], 1
    %76 = vsyncpa [#allocation4], 1

</llo_original>
